<compile_context>
chip_gen: v5e
topology: v5e:2x2
jax: 0.10.0
libtpu: 0.0.40
codegen_flags: <defaults>
</compile_context>

<pallas_src>
import math
from functools import partial

import jax
import jax.numpy as jnp
from jax.experimental import pallas as pl
from jax.experimental.pallas import tpu as pltpu


# ----------------------------------------------------------------------------
# Pallas kernel
# ----------------------------------------------------------------------------
def _center_ssa_kernel(x_ref, we_ref, be_ref, wd_ref, bd_ref,
                       ae_ref, diff_ref, *, inv_total):
    """Fused autoencoder + correlation-difference kernel (one batch tile).

    x_ref:    (R, TB, FD) f32   per-modality feature tile
    we_ref:   (R, FD, FD) bf16  encoder weight slices (resident)
    be_ref:   (1, FD)     f32   encoder bias
    wd_ref:   (R, FD, FD) bf16  decoder weight slices (resident)
    bd_ref:   (R, 1, FD)  f32   decoder bias slices
    ae_ref:   (1, 1)      f32   accumulator -> MSE autoencoder loss
    diff_ref: (R, 1)      f32   accumulator -> ||corr_x[r] - corr_emb||_F
    """
    step = pl.program_id(0)
    nsteps = pl.num_programs(0)
    R = x_ref.shape[0]

    @pl.when(step == 0)
    def _():
        ae_ref[...] = jnp.zeros_like(ae_ref)
        diff_ref[...] = jnp.zeros_like(diff_ref)

    x = x_ref[...]                                         # (R, TB, FD) f32

    # --- encoder: emb = concat_x @ W_enc + b  ==  sum_r x_r @ W_enc[r] + b ---
    emb = be_ref[...]                                      # (1, FD) -> bcast
    for r in range(R):
        emb = emb + jnp.dot(x[r].astype(jnp.bfloat16), we_ref[r],
                            preferred_element_type=jnp.float32)   # (TB, FD)

    # --- decoder + MSE (per-modality slice, no concat view needed) ----------
    emb16 = emb.astype(jnp.bfloat16)
    sse = jnp.float32(0.0)
    for r in range(R):
        dec_r = jnp.dot(emb16, wd_ref[r],
                        preferred_element_type=jnp.float32) + bd_ref[r]
        err = dec_r - x[r]
        sse = sse + jnp.sum(err * err)
    ae_ref[...] += sse                                     # finalize to mean later

    # --- correlation Frobenius norms via per-sample scalars ------------------
    # cos, ||x_n||^2, ||e_n||^2 computed from raw dot products + rsqrt scaling
    # (exactly matches F.normalize's eps=1e-12 clamp: rsqrt(max(n2, eps^2))).
    e2 = jnp.sum(emb * emb, axis=1, keepdims=True)         # (TB, 1)
    inv_e = jax.lax.rsqrt(jnp.maximum(e2, 1e-24))          # (TB, 1)

    xn2 = jnp.sum(x * x, axis=2, keepdims=True)            # (R, TB, 1)
    xe = jnp.sum(x * emb[None, :, :], axis=2, keepdims=True)   # (R, TB, 1)
    inv_x = jax.lax.rsqrt(jnp.maximum(xn2, 1e-24))         # (R, TB, 1)

    cos = xe * inv_x * inv_e[None, :, :]                   # (R, TB, 1)
    xx = xn2 * inv_x * inv_x                               # ||x_n||^2 (==1 unless ~0 row)
    ee = e2 * inv_e * inv_e                                # ||e_n||^2

    # per sample: ||x_n x_n^T - e_n e_n^T||_F^2 = xx^2 + ee^2 - 2 cos^2
    s = (jnp.sum(xx * xx, axis=1)                          # (R, 1)
         + jnp.sum(ee * ee)                                # scalar
         - 2.0 * jnp.sum(cos * cos, axis=1))               # (R, 1)
    diff_ref[...] += s

    @pl.when(step == nsteps - 1)
    def _():
        ae_ref[...] = ae_ref[...] * inv_total              # SSE -> mean
        diff_ref[...] = jnp.sqrt(jnp.maximum(diff_ref[...], 0.0))


def _pick_batch_tile(batch):
    # Biggest tile amortizes the ~0.35us/grid-step overhead; full-extent block
    # is the legal fallback when batch is not 8-aligned.
    for t in (1024, 512, 256, 128, 64, 32, 16, 8):
        if batch % t == 0:
            return t
    return batch


@jax.jit
def center_ssa_pallas(xs, w_enc, b_enc, w_dec, b_dec):
    """xs: tuple of (B, FD) f32 arrays (one per modality).
       w_enc/w_dec: (R, FD, FD) bf16 ; b_enc: (1, FD) f32 ; b_dec: (R, 1, FD) f32."""
    x_stack = jnp.stack(xs, axis=0)                        # (R, B, FD)
    R, B, FD = x_stack.shape
    tb = _pick_batch_tile(B)
    nsteps = B // tb

    kernel = partial(_center_ssa_kernel, inv_total=1.0 / float(B * R * FD))

    # VMEM budget: streamed x tile (double-buffered) + resident weights/biases.
    block_bytes = (2 * R * tb * FD * 4          # x tile, double buffered
                   + 2 * R * FD * FD * 2        # enc + dec weights (bf16)
                   + (FD + R * FD) * 4          # biases
                   + (1 + R) * 4)               # outputs
    cp_kwargs = dict(dimension_semantics=("arbitrary",))
    if block_bytes + (2 << 20) > (32 << 20):
        # TODO(synk): for very large FD also tile the K / N (R*FD) weight dims
        # so each weight block stays well under the 64 MiB v7x VMEM.
        cp_kwargs["vmem_limit_bytes"] = min(block_bytes + (4 << 20), 64 << 20)

    ae, diff = pl.pallas_call(
        kernel,
        grid=(nsteps,),
        out_shape=(jax.ShapeDtypeStruct((1, 1), jnp.float32),
                   jax.ShapeDtypeStruct((R, 1), jnp.float32)),
        in_specs=[
            pl.BlockSpec((R, tb, FD), lambda i: (0, i, 0)),   # x (streamed)
            pl.BlockSpec((R, FD, FD), lambda i: (0, 0, 0)),   # w_enc (resident)
            pl.BlockSpec((1, FD), lambda i: (0, 0)),          # b_enc
            pl.BlockSpec((R, FD, FD), lambda i: (0, 0, 0)),   # w_dec (resident)
            pl.BlockSpec((R, 1, FD), lambda i: (0, 0, 0)),    # b_dec
        ],
        out_specs=(
            pl.BlockSpec((1, 1), lambda i: (0, 0)),           # resident accumulator
            pl.BlockSpec((R, 1), lambda i: (0, 0)),           # resident accumulator
        ),
        compiler_params=pltpu.CompilerParams(**cp_kwargs),
    )(x_stack, w_enc, b_enc, w_dec, b_dec)
    return ae[0, 0], diff[:, 0]


# ----------------------------------------------------------------------------
# Host-side glue (scalar focal regularizer + bookkeeping), matching PyTorch
# ----------------------------------------------------------------------------
def _regularizer(loss1, loss2, beta=2.0, threshold=1e-05, method='exp'):
    if method == 'exp':
        if loss1 - loss2 > 0 + threshold:
            return beta * math.exp(loss1 - loss2) - 1
        return 0.0
    raise NotImplementedError(method)


class CenterSSALossPallas:
    def __init__(self, requirements, feature_dims,
                 beta=2.0, lamda=0.1, lamda_ae=0.5,
                 threshold=1e-5, reg_method='exp', key=None):
        self.requirements = requirements
        self.beta = beta
        self.lamda = lamda
        self.lamda_ae = lamda_ae
        self.threshold = threshold
        self.reg_method = reg_method
        R = len(requirements)
        FD = feature_dims
        in_dim = R * FD
        key = jax.random.PRNGKey(0) if key is None else key
        k1, k2, k3, k4 = jax.random.split(key, 4)
        # TODO(synk): the reference forward is `pass` and NaiveAutoEncoder /
        # extractor are not defined in the spec; a linear encoder/decoder pair
        # with identity feature extraction is assumed (same as previous version).
        self.w_enc = (jax.random.normal(k1, (in_dim, FD), jnp.float32)
                      * (1.0 / math.sqrt(in_dim)))
        self.b_enc = jax.random.normal(k2, (FD,), jnp.float32) * 0.01
        self.w_dec = (jax.random.normal(k3, (FD, in_dim), jnp.float32)
                      * (1.0 / math.sqrt(FD)))
        self.b_dec = jax.random.normal(k4, (in_dim,), jnp.float32) * 0.01

        # Cached kernel-layout parameters (cast/reshape once, not per call):
        #   encoder  concat_x @ W  == sum_r x_r @ W[r*FD:(r+1)*FD, :]
        #   decoder  (emb @ Wd)[:, r*FD:(r+1)*FD] == emb @ Wd[:, r*FD:(r+1)*FD]
        self.w_enc_k = self.w_enc.reshape(R, FD, FD).astype(jnp.bfloat16)
        self.b_enc_k = self.b_enc.reshape(1, FD)
        self.w_dec_k = jnp.transpose(self.w_dec.reshape(FD, R, FD),
                                     (1, 0, 2)).astype(jnp.bfloat16)
        self.b_dec_k = self.b_dec.reshape(R, 1, FD)

    def __call__(self, dict_loss, dict_x):
        xs = tuple(dict_x[r] for r in self.requirements)
        ae_loss, corr_diff = center_ssa_pallas(
            xs, self.w_enc_k, self.b_enc_k, self.w_dec_k, self.b_dec_k)

        # TODO(synk): batching multiple forward calls (stacking along M) would
        # raise MXU row utilization; single-call forward kept to match the spec.
        dict_ssa_loss, dict_total = {}, {}
        for mi, m in enumerate(self.requirements):
            focals = [_regularizer(dict_loss[m], dict_loss[n], self.beta,
                                   self.threshold, self.reg_method)
                      for n in self.requirements]
            dict_ssa_loss[m] = max(focals) * corr_diff[mi]
        for r in self.requirements:
            dict_total[r] = (dict_loss[r]
                             + self.lamda * dict_ssa_loss[r]
                             + self.lamda_ae * ae_loss)
        return {'ssaloss': dict_ssa_loss, 'total_loss': dict_total}


# ----------------------------------------------------------------------------
# Pure-JAX reference (explicit bmm correlations; same bf16 matmul policy)
# ----------------------------------------------------------------------------
def _reference(module, dict_x):
    xs = [dict_x[r] for r in module.requirements]
    concat_x = jnp.concatenate(xs, axis=1)
    emb = jnp.dot(concat_x.astype(jnp.bfloat16),
                  module.w_enc.astype(jnp.bfloat16),
                  preferred_element_type=jnp.float32) + module.b_enc
    dec = jnp.dot(emb.astype(jnp.bfloat16),
                  module.w_dec.astype(jnp.bfloat16),
                  preferred_element_type=jnp.float32) + module.b_dec
    ae = jnp.mean((dec - concat_x) ** 2)
    e_n = emb / jnp.maximum(jnp.linalg.norm(emb, axis=1, keepdims=True), 1e-12)
    corr_emb = jnp.einsum('bi,bj->bij', e_n, e_n)
    diffs = []
    for x in xs:
        xn = x / jnp.maximum(jnp.linalg.norm(x, axis=1, keepdims=True), 1e-12)
        corr = jnp.einsum('bi,bj->bij', xn, xn)
        diffs.append(jnp.sqrt(jnp.sum((corr - corr_emb) ** 2)))
    return ae, jnp.stack(diffs)


if __name__ == "__main__":
    requirements = ["rgb", "depth"]
    B, FD = 24, 128                       # batch tile 8 -> 3-step grid

    key = jax.random.PRNGKey(0)
    kx1, kx2, kp = jax.random.split(key, 3)
    dict_x = {
        "rgb": jax.random.normal(kx1, (B, FD), jnp.float32),
        "depth": jax.random.normal(kx2, (B, FD), jnp.float32),
    }
    dict_loss = {"rgb": 1.3, "depth": 0.7}

    module = CenterSSALossPallas(requirements, FD, key=kp)
    out = module(dict_loss, dict_x)
    jax.block_until_ready(out["total_loss"]["rgb"])

    # correctness check against the plain-JAX reference
    ae_ref, diff_ref = _reference(module, dict_x)
    ae_k, diff_k = center_ssa_pallas(
        tuple(dict_x[r] for r in requirements),
        module.w_enc_k, module.b_enc_k, module.w_dec_k, module.b_dec_k)
    jax.block_until_ready(diff_k)

    assert jnp.allclose(ae_k, ae_ref, rtol=1e-3, atol=1e-4), (ae_k, ae_ref)
    assert jnp.allclose(diff_k, diff_ref, rtol=1e-3, atol=1e-3), (diff_k, diff_ref)

    print("KERNEL_OK")
</pallas_src>

<mosaic_0001>
module attributes {stable_mosaic.version = 11 : i64} {
  func.func @_center_ssa_kernel(%arg0: i32, %arg1: memref<2x8x128xf32, #tpu.memory_space<vmem>>, %arg2: memref<2x128x128xbf16, #tpu.memory_space<vmem>>, %arg3: memref<1x128xf32, #tpu.memory_space<vmem>>, %arg4: memref<2x128x128xbf16, #tpu.memory_space<vmem>>, %arg5: memref<2x1x128xf32, #tpu.memory_space<vmem>>, %arg6: memref<1x1xf32, #tpu.memory_space<vmem>>, %arg7: memref<2x1xf32, #tpu.memory_space<vmem>>) attributes {dimension_semantics = [#tpu.dimension_semantics<arbitrary>], iteration_bounds = array<i64: 3>, scalar_prefetch = 0 : i64, scratch_operands = 0 : i64, tpu.core_type = #tpu.core_type<tc>, window_params = [{transform_indices = @transform_0, window_bounds = array<i64: 2, 8, 128>}, {pipeline_mode = #tpu.pipeline_mode<synchronous>, transform_indices = @transform_1, window_bounds = array<i64: 2, 128, 128>}, {pipeline_mode = #tpu.pipeline_mode<synchronous>, transform_indices = @transform_2, window_bounds = array<i64: 1, 128>}, {pipeline_mode = #tpu.pipeline_mode<synchronous>, transform_indices = @transform_3, window_bounds = array<i64: 2, 128, 128>}, {pipeline_mode = #tpu.pipeline_mode<synchronous>, transform_indices = @transform_4, window_bounds = array<i64: 2, 1, 128>}, {pipeline_mode = #tpu.pipeline_mode<synchronous>, transform_indices = @transform_5, window_bounds = array<i64: 1, 1>}, {pipeline_mode = #tpu.pipeline_mode<synchronous>, transform_indices = @transform_6, window_bounds = array<i64: 2, 1>}]} {
    %c0_i32 = arith.constant 0 : i32
    %0 = arith.cmpi eq, %arg0, %c0_i32 : i32
    %1 = arith.extui %0 : i1 to i32
    %c0_i32_0 = arith.constant 0 : i32
    %2 = arith.cmpi ne, %1, %c0_i32_0 : i32
    scf.if %2 {
      %cst_46 = arith.constant 0.000000e+00 : f32
      %102 = vector.broadcast %cst_46 : f32 to vector<1x1xf32>
      %c0_47 = arith.constant 0 : index
      %c0_48 = arith.constant 0 : index
      %103 = vector.load %arg6[%c0_47, %c0_48] : memref<1x1xf32, #tpu.memory_space<vmem>>, vector<1x1xf32>
      tpu.vector_store %arg6[%c0_47, %c0_48], %102 {strides = array<i32>} : memref<1x1xf32, #tpu.memory_space<vmem>>, vector<1x1xf32>,
      %cst_49 = arith.constant 0.000000e+00 : f32
      %104 = vector.broadcast %cst_49 : f32 to vector<2x1xf32>
      %c0_50 = arith.constant 0 : index
      %c0_51 = arith.constant 0 : index
      %105 = vector.load %arg7[%c0_50, %c0_51] : memref<2x1xf32, #tpu.memory_space<vmem>>, vector<2x1xf32>
      tpu.vector_store %arg7[%c0_50, %c0_51], %104 {strides = array<i32>} : memref<2x1xf32, #tpu.memory_space<vmem>>, vector<2x1xf32>,
    } else {
    }
    %c0 = arith.constant 0 : index
    %c0_1 = arith.constant 0 : index
    %c0_2 = arith.constant 0 : index
    %3 = vector.load %arg1[%c0, %c0_1, %c0_2] : memref<2x8x128xf32, #tpu.memory_space<vmem>>, vector<2x8x128xf32>
    %c0_3 = arith.constant 0 : index
    %c0_4 = arith.constant 0 : index
    %4 = vector.load %arg3[%c0_3, %c0_4] : memref<1x128xf32, #tpu.memory_space<vmem>>, vector<1x128xf32>
    %5 = vector.extract_strided_slice %3 {offsets = [0, 0, 0], sizes = [1, 8, 128], strides = [1, 1, 1]} : vector<2x8x128xf32> to vector<1x8x128xf32>
    %6 = vector.shape_cast %5 : vector<1x8x128xf32> to vector<8x128xf32>
    %7 = arith.truncf %6 : vector<8x128xf32> to vector<8x128xbf16>
    %c0_5 = arith.constant 0 : index
    %c0_6 = arith.constant 0 : index
    %c0_7 = arith.constant 0 : index
    %8 = vector.load %arg2[%c0_5, %c0_6, %c0_7] : memref<2x128x128xbf16, #tpu.memory_space<vmem>>, vector<1x128x128xbf16>
    %9 = vector.shape_cast %8 : vector<1x128x128xbf16> to vector<128x128xbf16>
    %cst = arith.constant dense<0.000000e+00> : vector<8x128xf32>
    %10 = tpu.matmul %7, %9, %cst {dimension_numbers = #tpu.dot_dimension_numbers<[1], [0], [0], [1], [0, 0, 1, 1], [], []>} : vector<8x128xbf16>, vector<128x128xbf16>, vector<8x128xf32> -> vector<8x128xf32>
    %11 = vector.broadcast %4 : vector<1x128xf32> to vector<8x128xf32>
    %12 = arith.addf %11, %10 : vector<8x128xf32>
    %13 = vector.extract_strided_slice %3 {offsets = [1, 0, 0], sizes = [1, 8, 128], strides = [1, 1, 1]} : vector<2x8x128xf32> to vector<1x8x128xf32>
    %14 = vector.shape_cast %13 : vector<1x8x128xf32> to vector<8x128xf32>
    %15 = arith.truncf %14 : vector<8x128xf32> to vector<8x128xbf16>
    %c1 = arith.constant 1 : index
    %c0_8 = arith.constant 0 : index
    %c0_9 = arith.constant 0 : index
    %16 = vector.load %arg2[%c1, %c0_8, %c0_9] : memref<2x128x128xbf16, #tpu.memory_space<vmem>>, vector<1x128x128xbf16>
    %17 = vector.shape_cast %16 : vector<1x128x128xbf16> to vector<128x128xbf16>
    %cst_10 = arith.constant dense<0.000000e+00> : vector<8x128xf32>
    %18 = tpu.matmul %15, %17, %cst_10 {dimension_numbers = #tpu.dot_dimension_numbers<[1], [0], [0], [1], [0, 0, 1, 1], [], []>} : vector<8x128xbf16>, vector<128x128xbf16>, vector<8x128xf32> -> vector<8x128xf32>
    %19 = arith.addf %12, %18 : vector<8x128xf32>
    %20 = arith.truncf %19 : vector<8x128xf32> to vector<8x128xbf16>
    %c0_11 = arith.constant 0 : index
    %c0_12 = arith.constant 0 : index
    %c0_13 = arith.constant 0 : index
    %21 = vector.load %arg4[%c0_11, %c0_12, %c0_13] : memref<2x128x128xbf16, #tpu.memory_space<vmem>>, vector<1x128x128xbf16>
    %22 = vector.shape_cast %21 : vector<1x128x128xbf16> to vector<128x128xbf16>
    %cst_14 = arith.constant dense<0.000000e+00> : vector<8x128xf32>
    %23 = tpu.matmul %20, %22, %cst_14 {dimension_numbers = #tpu.dot_dimension_numbers<[1], [0], [0], [1], [0, 0, 1, 1], [], []>} : vector<8x128xbf16>, vector<128x128xbf16>, vector<8x128xf32> -> vector<8x128xf32>
    %c0_15 = arith.constant 0 : index
    %c0_16 = arith.constant 0 : index
    %c0_17 = arith.constant 0 : index
    %24 = vector.load %arg5[%c0_15, %c0_16, %c0_17] : memref<2x1x128xf32, #tpu.memory_space<vmem>>, vector<1x1x128xf32>
    %25 = vector.shape_cast %24 : vector<1x1x128xf32> to vector<1x128xf32>
    %26 = vector.broadcast %25 : vector<1x128xf32> to vector<8x128xf32>
    %27 = arith.addf %23, %26 : vector<8x128xf32>
    %28 = vector.extract_strided_slice %3 {offsets = [0, 0, 0], sizes = [1, 8, 128], strides = [1, 1, 1]} : vector<2x8x128xf32> to vector<1x8x128xf32>
    %29 = vector.shape_cast %28 : vector<1x8x128xf32> to vector<8x128xf32>
    %30 = arith.subf %27, %29 : vector<8x128xf32>
    %31 = arith.mulf %30, %30 : vector<8x128xf32>
    %32 = vector.shape_cast %31 : vector<8x128xf32> to vector<1x8x128xf32>
    %cst_18 = arith.constant dense<0.000000e+00> : vector<1xf32>
    %33 = vector.multi_reduction <add>, %32, %cst_18 [1, 2] : vector<1x8x128xf32> to vector<1xf32>
    %34 = vector.shape_cast %33 : vector<1xf32> to vector<1x1x1xf32>
    %35 = vector.extract %34[0, 0, 0] : f32 from vector<1x1x1xf32>
    %cst_19 = arith.constant 0.000000e+00 : f32
    %36 = arith.addf %cst_19, %35 : f32
    %c1_20 = arith.constant 1 : index
    %c0_21 = arith.constant 0 : index
    %c0_22 = arith.constant 0 : index
    %37 = vector.load %arg4[%c1_20, %c0_21, %c0_22] : memref<2x128x128xbf16, #tpu.memory_space<vmem>>, vector<1x128x128xbf16>
    %38 = vector.shape_cast %37 : vector<1x128x128xbf16> to vector<128x128xbf16>
    %cst_23 = arith.constant dense<0.000000e+00> : vector<8x128xf32>
    %39 = tpu.matmul %20, %38, %cst_23 {dimension_numbers = #tpu.dot_dimension_numbers<[1], [0], [0], [1], [0, 0, 1, 1], [], []>} : vector<8x128xbf16>, vector<128x128xbf16>, vector<8x128xf32> -> vector<8x128xf32>
    %c1_24 = arith.constant 1 : index
    %c0_25 = arith.constant 0 : index
    %c0_26 = arith.constant 0 : index
    %40 = vector.load %arg5[%c1_24, %c0_25, %c0_26] : memref<2x1x128xf32, #tpu.memory_space<vmem>>, vector<1x1x128xf32>
    %41 = vector.shape_cast %40 : vector<1x1x128xf32> to vector<1x128xf32>
    %42 = vector.broadcast %41 : vector<1x128xf32> to vector<8x128xf32>
    %43 = arith.addf %39, %42 : vector<8x128xf32>
    %44 = vector.extract_strided_slice %3 {offsets = [1, 0, 0], sizes = [1, 8, 128], strides = [1, 1, 1]} : vector<2x8x128xf32> to vector<1x8x128xf32>
    %45 = vector.shape_cast %44 : vector<1x8x128xf32> to vector<8x128xf32>
    %46 = arith.subf %43, %45 : vector<8x128xf32>
    %47 = arith.mulf %46, %46 : vector<8x128xf32>
    %48 = vector.shape_cast %47 : vector<8x128xf32> to vector<1x8x128xf32>
    %cst_27 = arith.constant dense<0.000000e+00> : vector<1xf32>
    %49 = vector.multi_reduction <add>, %48, %cst_27 [1, 2] : vector<1x8x128xf32> to vector<1xf32>
    %50 = vector.shape_cast %49 : vector<1xf32> to vector<1x1x1xf32>
    %51 = vector.extract %50[0, 0, 0] : f32 from vector<1x1x1xf32>
    %52 = arith.addf %36, %51 : f32
    %c0_28 = arith.constant 0 : index
    %c0_29 = arith.constant 0 : index
    %53 = vector.load %arg6[%c0_28, %c0_29] : memref<1x1xf32, #tpu.memory_space<vmem>>, vector<1x1xf32>
    %54 = vector.broadcast %52 : f32 to vector<1x1xf32>
    %55 = arith.addf %53, %54 : vector<1x1xf32>
    %c0_30 = arith.constant 0 : index
    %c0_31 = arith.constant 0 : index
    %56 = vector.load %arg6[%c0_30, %c0_31] : memref<1x1xf32, #tpu.memory_space<vmem>>, vector<1x1xf32>
    tpu.vector_store %arg6[%c0_30, %c0_31], %55 {strides = array<i32>} : memref<1x1xf32, #tpu.memory_space<vmem>>, vector<1x1xf32>,
    %57 = arith.mulf %19, %19 : vector<8x128xf32>
    %cst_32 = arith.constant dense<0.000000e+00> : vector<8xf32>
    %58 = vector.multi_reduction <add>, %57, %cst_32 [1] : vector<8x128xf32> to vector<8xf32>
    %59 = vector.shape_cast %58 : vector<8xf32> to vector<8x1xf32>
    %cst_33 = arith.constant 1.000000e-24 : f32
    %60 = vector.broadcast %cst_33 : f32 to vector<8x1xf32>
    %61 = arith.maximumf %59, %60 : vector<8x1xf32>
    %62 = math.rsqrt %61 : vector<8x1xf32>
    %63 = arith.mulf %3, %3 : vector<2x8x128xf32>
    %cst_34 = arith.constant dense<0.000000e+00> : vector<2x8xf32>
    %64 = vector.multi_reduction <add>, %63, %cst_34 [2] : vector<2x8x128xf32> to vector<2x8xf32>
    %65 = vector.shape_cast %64 : vector<2x8xf32> to vector<2x8x1xf32>
    %66 = vector.shape_cast %19 : vector<8x128xf32> to vector<1x8x128xf32>
    %67 = vector.broadcast %66 : vector<1x8x128xf32> to vector<2x8x128xf32>
    %68 = arith.mulf %3, %67 : vector<2x8x128xf32>
    %cst_35 = arith.constant dense<0.000000e+00> : vector<2x8xf32>
    %69 = vector.multi_reduction <add>, %68, %cst_35 [2] : vector<2x8x128xf32> to vector<2x8xf32>
    %70 = vector.shape_cast %69 : vector<2x8xf32> to vector<2x8x1xf32>
    %cst_36 = arith.constant 1.000000e-24 : f32
    %71 = vector.broadcast %cst_36 : f32 to vector<2x8x1xf32>
    %72 = arith.maximumf %65, %71 : vector<2x8x1xf32>
    %73 = math.rsqrt %72 : vector<2x8x1xf32>
    %74 = arith.mulf %70, %73 : vector<2x8x1xf32>
    %75 = vector.shape_cast %62 : vector<8x1xf32> to vector<1x8x1xf32>
    %76 = vector.broadcast %75 : vector<1x8x1xf32> to vector<2x8x1xf32>
    %77 = arith.mulf %74, %76 : vector<2x8x1xf32>
    %78 = arith.mulf %65, %73 : vector<2x8x1xf32>
    %79 = arith.mulf %78, %73 : vector<2x8x1xf32>
    %80 = arith.mulf %59, %62 : vector<8x1xf32>
    %81 = arith.mulf %80, %62 : vector<8x1xf32>
    %82 = arith.mulf %79, %79 : vector<2x8x1xf32>
    %cst_37 = arith.constant dense<0.000000e+00> : vector<2x1xf32>
    %83 = vector.multi_reduction <add>, %82, %cst_37 [1] : vector<2x8x1xf32> to vector<2x1xf32>
    %84 = arith.mulf %81, %81 : vector<8x1xf32>
    %85 = vector.shape_cast %84 : vector<8x1xf32> to vector<1x8x1xf32>
    %cst_38 = arith.constant dense<0.000000e+00> : vector<1xf32>
    %86 = vector.multi_reduction <add>, %85, %cst_38 [1, 2] : vector<1x8x1xf32> to vector<1xf32>
    %87 = vector.shape_cast %86 : vector<1xf32> to vector<1x1x1xf32>
    %88 = vector.extract %87[0, 0, 0] : f32 from vector<1x1x1xf32>
    %89 = vector.broadcast %88 : f32 to vector<2x1xf32>
    %90 = arith.addf %83, %89 : vector<2x1xf32>
    %91 = arith.mulf %77, %77 : vector<2x8x1xf32>
    %cst_39 = arith.constant dense<0.000000e+00> : vector<2x1xf32>
    %92 = vector.multi_reduction <add>, %91, %cst_39 [1] : vector<2x8x1xf32> to vector<2x1xf32>
    %cst_40 = arith.constant 2.000000e+00 : f32
    %93 = vector.broadcast %cst_40 : f32 to vector<2x1xf32>
    %94 = arith.mulf %93, %92 : vector<2x1xf32>
    %95 = arith.subf %90, %94 : vector<2x1xf32>
    %c0_41 = arith.constant 0 : index
    %c0_42 = arith.constant 0 : index
    %96 = vector.load %arg7[%c0_41, %c0_42] : memref<2x1xf32, #tpu.memory_space<vmem>>, vector<2x1xf32>
    %97 = arith.addf %96, %95 : vector<2x1xf32>
    %c0_43 = arith.constant 0 : index
    %c0_44 = arith.constant 0 : index
    %98 = vector.load %arg7[%c0_43, %c0_44] : memref<2x1xf32, #tpu.memory_space<vmem>>, vector<2x1xf32>
    tpu.vector_store %arg7[%c0_43, %c0_44], %97 {strides = array<i32>} : memref<2x1xf32, #tpu.memory_space<vmem>>, vector<2x1xf32>,
    %c2_i32 = arith.constant 2 : i32
    %99 = arith.cmpi eq, %arg0, %c2_i32 : i32
    %100 = arith.extui %99 : i1 to i32
    %c0_i32_45 = arith.constant 0 : i32
    %101 = arith.cmpi ne, %100, %c0_i32_45 : i32
    scf.if %101 {
      %c0_46 = arith.constant 0 : index
      %c0_47 = arith.constant 0 : index
      %102 = vector.load %arg6[%c0_46, %c0_47] : memref<1x1xf32, #tpu.memory_space<vmem>>, vector<1x1xf32>
      %cst_48 = arith.constant 1.62760422E-4 : f32
      %103 = vector.broadcast %cst_48 : f32 to vector<1x1xf32>
      %104 = arith.mulf %102, %103 : vector<1x1xf32>
      %c0_49 = arith.constant 0 : index
      %c0_50 = arith.constant 0 : index
      %105 = vector.load %arg6[%c0_49, %c0_50] : memref<1x1xf32, #tpu.memory_space<vmem>>, vector<1x1xf32>
      tpu.vector_store %arg6[%c0_49, %c0_50], %104 {strides = array<i32>} : memref<1x1xf32, #tpu.memory_space<vmem>>, vector<1x1xf32>,
      %c0_51 = arith.constant 0 : index
      %c0_52 = arith.constant 0 : index
      %106 = vector.load %arg7[%c0_51, %c0_52] : memref<2x1xf32, #tpu.memory_space<vmem>>, vector<2x1xf32>
      %cst_53 = arith.constant 0.000000e+00 : f32
      %107 = vector.broadcast %cst_53 : f32 to vector<2x1xf32>
      %108 = arith.maximumf %106, %107 : vector<2x1xf32>
      %109 = math.sqrt %108 : vector<2x1xf32>
      %c0_54 = arith.constant 0 : index
      %c0_55 = arith.constant 0 : index
      %110 = vector.load %arg7[%c0_54, %c0_55] : memref<2x1xf32, #tpu.memory_space<vmem>>, vector<2x1xf32>
      tpu.vector_store %arg7[%c0_54, %c0_55], %109 {strides = array<i32>} : memref<2x1xf32, #tpu.memory_space<vmem>>, vector<2x1xf32>,
    } else {
    }
    return
  }
  func.func @transform_0(%arg0: i32) -> (i32, i32, i32) {
    %c0_i32 = arith.constant 0 : i32
    %c0_i32_0 = arith.constant 0 : i32
    %c0_i32_1 = arith.constant 0 : i32
    return %c0_i32, %arg0, %c0_i32_0 : i32, i32, i32
  }
  func.func @transform_1(%arg0: i32) -> (i32, i32, i32) {
    %c0_i32 = arith.constant 0 : i32
    %c0_i32_0 = arith.constant 0 : i32
    %c0_i32_1 = arith.constant 0 : i32
    %c0_i32_2 = arith.constant 0 : i32
    return %c0_i32, %c0_i32_0, %c0_i32_1 : i32, i32, i32
  }
  func.func @transform_2(%arg0: i32) -> (i32, i32) {
    %c0_i32 = arith.constant 0 : i32
    %c0_i32_0 = arith.constant 0 : i32
    %c0_i32_1 = arith.constant 0 : i32
    return %c0_i32, %c0_i32_0 : i32, i32
  }
  func.func @transform_3(%arg0: i32) -> (i32, i32, i32) {
    %c0_i32 = arith.constant 0 : i32
    %c0_i32_0 = arith.constant 0 : i32
    %c0_i32_1 = arith.constant 0 : i32
    %c0_i32_2 = arith.constant 0 : i32
    return %c0_i32, %c0_i32_0, %c0_i32_1 : i32, i32, i32
  }
  func.func @transform_4(%arg0: i32) -> (i32, i32, i32) {
    %c0_i32 = arith.constant 0 : i32
    %c0_i32_0 = arith.constant 0 : i32
    %c0_i32_1 = arith.constant 0 : i32
    %c0_i32_2 = arith.constant 0 : i32
    return %c0_i32, %c0_i32_0, %c0_i32_1 : i32, i32, i32
  }
  func.func @transform_5(%arg0: i32) -> (i32, i32) {
    %c0_i32 = arith.constant 0 : i32
    %c0_i32_0 = arith.constant 0 : i32
    %c0_i32_1 = arith.constant 0 : i32
    return %c0_i32, %c0_i32_0 : i32, i32
  }
  func.func @transform_6(%arg0: i32) -> (i32, i32) {
    %c0_i32 = arith.constant 0 : i32
    %c0_i32_0 = arith.constant 0 : i32
    %c0_i32_1 = arith.constant 0 : i32
    return %c0_i32, %c0_i32_0 : i32, i32
  }
}

</mosaic_0001>

<llo_original>
// kernel: center_ssa_pallas.1
$region0: #{center_ssa_pallas.1}
  #allocation0 [shape = 'u32[]', space=smem, size = 0x4, offset = 0x4, fixed_abs, tag = 'smem constant byte address 0x4 - core index']
  #allocation1 [shape = 'u32[72,128]{1,0:T(1,128)}', space=vmem, size = 0x9000, scoped, tag = 'internal scratch']
  %s0 = inlined_call_operand.vmem [shape: f32[2,24,128], index: 0, kind: input, shape index: {}]
  %s1 = inlined_call_operand.hbm [shape: bf16[2,128,128], index: 1, kind: input, shape index: {}]
  %s2 = inlined_call_operand.vmem [shape: f32[1,128], index: 2, kind: input, shape index: {}]
  %s3 = inlined_call_operand.hbm [shape: bf16[2,128,128], index: 3, kind: input, shape index: {}]
  %s4 = inlined_call_operand.vmem [shape: f32[2,1,128], index: 4, kind: input, shape index: {}]
  %s5 = inlined_call_operand.hbm [shape: f32[1,1], index: 5, kind: output, shape index: {0}]
  %s6 = inlined_call_operand.vmem [shape: f32[2,1], index: 6, kind: output, shape index: {1}]
  %7 = xla_tuple %s5, %s6
  %s8 = sld [smem:[#allocation0]]
  $region115: #{center_ssa_pallas.1} parent=0
    _
  %s10 = ssub.s32 1, %s8
  %s11 = scalar_select 0, %s10, %s8
  $region1: #{center_ssa_pallas.1} parent=0
    #allocation2 [shape = 'u8[16384]{0}', space=vmem, size = 0x4000, scoped, tag = 'input window, operand 0']
    #allocation3 [shape = 'u8[65536]{0}', space=vmem, size = 0x10000, scoped, tag = 'input window, operand 1, single buffered']
    #allocation4 [shape = 's32[2]{0}', space=sflag, size = 0x8, scoped, tag = 'scoped memory for center_ssa_pallas.1']
    #allocation5 [shape = 's32[2]{0}', space=sflag, size = 0x8, scoped, tag = 'scoped memory for center_ssa_pallas.1']
    #allocation6 [shape = 'u8[65536]{0}', space=vmem, size = 0x10000, scoped, tag = 'input window, operand 3, single buffered']
    #allocation7 [shape = 's32[1]{0}', space=sflag, size = 0x4, scoped, tag = 'scoped memory for center_ssa_pallas.1']
    #allocation8 [shape = 'u8[512]{0}', space=vmem, size = 0x400, scoped, tag = 'output window, operand 0, single buffered']
    %12 = vsyncpa [#allocation4], 0
    %13 = vsyncpa [#allocation7], 0
    %14 = vsyncpa [#allocation5], 0
    loop: start=0, step=1, limit=5
    $region2: #{center_ssa_pallas.1} parent=1 // loop_pre_header
      _
    $region3: #{center_ssa_pallas.1} parent=1 // loop_header
      %s16 = sphi 0, %s20
      %p17 = scmp.ge.s32.totalorder %s16, 5
      %s26 = sphi 0, %s28
      %s29 = sphi 0, %s26
      %s30 = sphi 0, %s29
      %s46 = sphi 0, %s30
      %s50 = sphi 0, %s50
      %s52 = sphi 0, %s50
      %s53 = sphi 0, %s52
      %s67 = sphi 0, %s53
      %s71 = sphi 0, %s71
      %s73 = sphi 0, %s71
      %s74 = sphi 0, %s73
      %s88 = sphi 0, %s74
      %s92 = sphi 0, %s92
      %s94 = sphi 0, %s92
      %s95 = sphi 0, %s94
      %s109 = sphi 0, %s95
      %s113 = sphi 0, %s113
      %s115 = sphi 0, %s113
      %s116 = sphi 0, %s115
      %s130 = sphi 0, %s116
      %s134 = sphi 0, %s134
      %s136 = sphi 0, %s134
      %s137 = sphi 0, %s136
      %s151 = sphi 0, %s137
      %s155 = sphi 0, %s155
      %s157 = sphi 0, %s155
      %s158 = sphi 0, %s157
      %s172 = sphi 0, %s158
    $region4: #{center_ssa_pallas.1} parent=1 // loop_header_branch
      %19 = sbr.rel (%p17) target = $region8
    $region5: #{center_ssa_pallas.1} parent=1 // loop_body
      %s21 = ssub.s32 %s16, 1
      %s22 = ssub.s32 %s16, 2
      %s23 = sadd.s32 %s16, 1
      %s24 = ssub.s32 %s16, %s23
      %p25 = scmp.eq.s32.totalorder %s24, 0
      %s27 = sadd.s32 %s26, 1
      %s28 = scalar_select %p25, %s26, %s27
      %p31 = pneg %p25
      %p32 = scmp.eq.s32.totalorder %s16, 2
      %p33 = por %p31, %p32
      %p34 = scmp.ne.s32.totalorder %s26, %s29
      %p35 = scmp.eq.s32.totalorder %s16, 0
      %p36 = por %p34, %p35
      %p37 = scmp.ne.s32.totalorder %s26, %s29
      %p38 = scmp.eq.s32.totalorder %s21, 2
      %p39 = por %p37, %p38
      %p40 = scmp.ne.s32.totalorder %s29, %s30
      %p41 = scmp.eq.s32.totalorder %s21, 0
      %p42 = por %p40, %p41
      %p43 = scmp.ne.s32.totalorder %s29, %s30
      %p44 = scmp.eq.s32.totalorder %s22, 2
      %p45 = por %p43, %p44
      %p47 = scmp.ne.s32.totalorder %s30, %s46
      %p48 = scmp.eq.s32.totalorder %s22, 0
      %p49 = por %p47, %p48
      %s51 = sadd.s32 %s50, 1
      %p54 = scmp.eq.s32.totalorder %s16, 2
      %p55 = scmp.ne.s32.totalorder %s50, %s52
      %p56 = scmp.eq.s32.totalorder %s16, 0
      %p57 = por %p55, %p56
      %p58 = scmp.ne.s32.totalorder %s50, %s52
      %p59 = scmp.eq.s32.totalorder %s21, 2
      %p60 = por %p58, %p59
      %p61 = scmp.ne.s32.totalorder %s52, %s53
      %p62 = scmp.eq.s32.totalorder %s21, 0
      %p63 = por %p61, %p62
      %p64 = scmp.ne.s32.totalorder %s52, %s53
      %p65 = scmp.eq.s32.totalorder %s22, 2
      %p66 = por %p64, %p65
      %p68 = scmp.ne.s32.totalorder %s53, %s67
      %p69 = scmp.eq.s32.totalorder %s22, 0
      %p70 = por %p68, %p69
      %s72 = sadd.s32 %s71, 1
      %p75 = scmp.eq.s32.totalorder %s16, 2
      %p76 = scmp.ne.s32.totalorder %s71, %s73
      %p77 = scmp.eq.s32.totalorder %s16, 0
      %p78 = por %p76, %p77
      %p79 = scmp.ne.s32.totalorder %s71, %s73
      %p80 = scmp.eq.s32.totalorder %s21, 2
      %p81 = por %p79, %p80
      %p82 = scmp.ne.s32.totalorder %s73, %s74
      %p83 = scmp.eq.s32.totalorder %s21, 0
      %p84 = por %p82, %p83
      %p85 = scmp.ne.s32.totalorder %s73, %s74
      %p86 = scmp.eq.s32.totalorder %s22, 2
      %p87 = por %p85, %p86
      %p89 = scmp.ne.s32.totalorder %s74, %s88
      %p90 = scmp.eq.s32.totalorder %s22, 0
      %p91 = por %p89, %p90
      %s93 = sadd.s32 %s92, 1
      %p96 = scmp.eq.s32.totalorder %s16, 2
      %p97 = scmp.ne.s32.totalorder %s92, %s94
      %p98 = scmp.eq.s32.totalorder %s16, 0
      %p99 = por %p97, %p98
      %p100 = scmp.ne.s32.totalorder %s92, %s94
      %p101 = scmp.eq.s32.totalorder %s21, 2
      %p102 = por %p100, %p101
      %p103 = scmp.ne.s32.totalorder %s94, %s95
      %p104 = scmp.eq.s32.totalorder %s21, 0
      %p105 = por %p103, %p104
      %p106 = scmp.ne.s32.totalorder %s94, %s95
      %p107 = scmp.eq.s32.totalorder %s22, 2
      %p108 = por %p106, %p107
      %p110 = scmp.ne.s32.totalorder %s95, %s109
      %p111 = scmp.eq.s32.totalorder %s22, 0
      %p112 = por %p110, %p111
      %s114 = sadd.s32 %s113, 1
      %p117 = scmp.eq.s32.totalorder %s16, 2
      %p118 = scmp.ne.s32.totalorder %s113, %s115
      %p119 = scmp.eq.s32.totalorder %s16, 0
      %p120 = por %p118, %p119
      %p121 = scmp.ne.s32.totalorder %s113, %s115
      %p122 = scmp.eq.s32.totalorder %s21, 2
      %p123 = por %p121, %p122
      %p124 = scmp.ne.s32.totalorder %s115, %s116
      %p125 = scmp.eq.s32.totalorder %s21, 0
      %p126 = por %p124, %p125
      %p127 = scmp.ne.s32.totalorder %s115, %s116
      %p128 = scmp.eq.s32.totalorder %s22, 2
      %p129 = por %p127, %p128
      %p131 = scmp.ne.s32.totalorder %s116, %s130
      %p132 = scmp.eq.s32.totalorder %s22, 0
      %p133 = por %p131, %p132
      %s135 = sadd.s32 %s134, 1
      %p138 = scmp.eq.s32.totalorder %s16, 2
      %p139 = scmp.ne.s32.totalorder %s134, %s136
      %p140 = scmp.eq.s32.totalorder %s16, 0
      %p141 = por %p139, %p140
      %p142 = scmp.ne.s32.totalorder %s134, %s136
      %p143 = scmp.eq.s32.totalorder %s21, 2
      %p144 = por %p142, %p143
      %p145 = scmp.ne.s32.totalorder %s136, %s137
      %p146 = scmp.eq.s32.totalorder %s21, 0
      %p147 = por %p145, %p146
      %p148 = scmp.ne.s32.totalorder %s136, %s137
      %p149 = scmp.eq.s32.totalorder %s22, 2
      %p150 = por %p148, %p149
      %p152 = scmp.ne.s32.totalorder %s137, %s151
      %p153 = scmp.eq.s32.totalorder %s22, 0
      %p154 = por %p152, %p153
      %s156 = sadd.s32 %s155, 1
      %p159 = scmp.eq.s32.totalorder %s16, 2
      %p160 = scmp.ne.s32.totalorder %s155, %s157
      %p161 = scmp.eq.s32.totalorder %s16, 0
      %p162 = por %p160, %p161
      %p163 = scmp.ne.s32.totalorder %s155, %s157
      %p164 = scmp.eq.s32.totalorder %s21, 2
      %p165 = por %p163, %p164
      %p166 = scmp.ne.s32.totalorder %s157, %s158
      %p167 = scmp.eq.s32.totalorder %s21, 0
      %p168 = por %p166, %p167
      %p169 = scmp.ne.s32.totalorder %s157, %s158
      %p170 = scmp.eq.s32.totalorder %s22, 2
      %p171 = por %p169, %p170
      %p173 = scmp.ne.s32.totalorder %s158, %s172
      %p174 = scmp.eq.s32.totalorder %s22, 0
      %p175 = por %p173, %p174
      %p176 = scmp.le.s32.totalorder 1, %s16
      %p177 = scmp.lt.s32.totalorder %s16, 4
      %p178 = pnand %p176, %p177
      %p179 = pneg %p178
      // Predicated region
      $region9: #{center_ssa_pallas.1} parent=5 // pred_check
        _
      $region10: #{center_ssa_pallas.1} parent=5 // pred_check_branch
        %181 = sbr.rel (%p178) target = $region12
      $region11: #{center_ssa_pallas.1} parent=5 // pred_region
        %s182 = ssub.s32 %s16, 1
        // Predicated region
        $region13: #{center_ssa_pallas.1} parent=11 // pred_check
          %p183 = pneg %p63
        $region14: #{center_ssa_pallas.1} parent=11 // pred_check_branch
          %185 = sbr.rel (%p183) target = $region16
        $region15: #{center_ssa_pallas.1} parent=11 // pred_region
          %187 = vsyncadd [#allocation4], 0
          %s188 = sshll.u32 %s1, 4
          %s189 = int_to_ptr.hbm [resolvable:$true] %s188
          %s190 = sshll.u32 [#allocation3], 4
          %s191 = int_to_ptr.vmem [resolvable:$true] %s190
          %196 = dma.hbm_to_vmem [thread:$0]  %s189, 2048, %s191, [#allocation4], 64, 64, 4
        $region16: #{center_ssa_pallas.1} parent=11 // pred_fallthru
          _
        // Predicated region
        $region17: #{center_ssa_pallas.1} parent=11 // pred_check
          %p197 = pneg %p84
        $region18: #{center_ssa_pallas.1} parent=11 // pred_check_branch
          %199 = sbr.rel (%p197) target = $region20
        $region19: #{center_ssa_pallas.1} parent=11 // pred_region
          _
        $region20: #{center_ssa_pallas.1} parent=11 // pred_fallthru
          _
        // Predicated region
        $region21: #{center_ssa_pallas.1} parent=11 // pred_check
          %p200 = pneg %p105
        $region22: #{center_ssa_pallas.1} parent=11 // pred_check_branch
          %202 = sbr.rel (%p200) target = $region24
        $region23: #{center_ssa_pallas.1} parent=11 // pred_region
          %204 = vsyncadd [#allocation7], 0
          %s205 = sshll.u32 %s3, 4
          %s206 = int_to_ptr.hbm [resolvable:$true] %s205
          %s207 = sshll.u32 [#allocation6], 4
          %s208 = int_to_ptr.vmem [resolvable:$true] %s207
          %213 = dma.hbm_to_vmem [thread:$0]  %s206, 2048, %s208, [#allocation7], 64, 64, 4
        $region24: #{center_ssa_pallas.1} parent=11 // pred_fallthru
          _
        // Predicated region
        $region25: #{center_ssa_pallas.1} parent=11 // pred_check
          %p214 = pneg %p126
        $region26: #{center_ssa_pallas.1} parent=11 // pred_check_branch
          %216 = sbr.rel (%p214) target = $region28
        $region27: #{center_ssa_pallas.1} parent=11 // pred_region
          _
        $region28: #{center_ssa_pallas.1} parent=11 // pred_fallthru
          _
      $region12: #{center_ssa_pallas.1} parent=5 // pred_fallthru
        _
      %p217 = scmp.lt.s32.totalorder %s16, 3
      // Predicated region
      $region29: #{center_ssa_pallas.1} parent=5 // pred_check
        %p218 = pneg %p217
      $region30: #{center_ssa_pallas.1} parent=5 // pred_check_branch
        %220 = sbr.rel (%p218) target = $region32
      $region31: #{center_ssa_pallas.1} parent=5 // pred_region
        // Predicated region
        $region33: #{center_ssa_pallas.1} parent=31 // pred_check
          %p221 = pneg %p36
        $region34: #{center_ssa_pallas.1} parent=31 // pred_check_branch
          %223 = sbr.rel (%p221) target = $region36
        $region35: #{center_ssa_pallas.1} parent=31 // pred_region
          %s224 = sand.u32 %s26, 1
          %s225 = sand.u32 %s26, 1
          %s226 = smul.addr %s225, 16
          %s227 = scalar_lea.vmem [#allocation2], %s226
          %s228 = smul.addr %s16, 8
          %s229 = scalar_lea.vmem %s0, %s228
          // Predicated region
          $region37: #{center_ssa_pallas.1} parent=35 // pred_check
            _
          $region38: #{center_ssa_pallas.1} parent=35 // pred_check_branch
            %231 = sbr.rel (0) target = $region40
          $region39: #{center_ssa_pallas.1} parent=35 // pred_region
            // Predicated region
            $region41: #{center_ssa_pallas.1} parent=39 // pred_check
              _
            $region42: #{center_ssa_pallas.1} parent=39 // pred_check_branch
              %233 = sbr.rel (0) target = $region44
            $region43: #{center_ssa_pallas.1} parent=39 // pred_region
              // Predicated region
              $region56: #{center_ssa_pallas.1} parent=43 // pred_check
                _
              $region57: #{center_ssa_pallas.1} parent=43 // pred_check_branch
                %251 = sbr.rel (0) target = $region59
              $region58: #{center_ssa_pallas.1} parent=43 // pred_region
                loop: start=0, step=1, limit=1
                $region60: #{center_ssa_pallas.1} parent=58 // loop_pre_header
                  _
                $region61: #{center_ssa_pallas.1} parent=58 // loop_header
                  %s253 = sphi 0, %s257
                  %p254 = scmp.ge.s32.totalorder %s253, 1
                  %s258 = sphi %s229, %s229
                  %s259 = sphi %s227, %s227
                $region62: #{center_ssa_pallas.1} parent=58 // loop_header_branch
                  %256 = sbr.rel (%p254) target = $region66
                $region63: #{center_ssa_pallas.1} parent=58 // loop_body
                  %v260 = vld [vmem:[%s258] sm:$0xff]
                  %261 = vst [vmem:[%s259] sm:$0xff] %v260
                  %v262 = vld [vmem:[%s258 + $0x18] sm:$0xff]
                  %263 = vst [vmem:[%s259 + $0x8] sm:$0xff] %v262
                $region64: #{center_ssa_pallas.1} parent=58 // loop_footer
                  %s257 = sadd.s32 1, %s253
                $region65: #{center_ssa_pallas.1} parent=58 // loop_footer_branch
                  %252 = sbr.rel target = $region61
                $region66: #{center_ssa_pallas.1} parent=58 // loop_exit
                  _
              $region59: #{center_ssa_pallas.1} parent=43 // pred_fallthru
                _
              // Predicated region
              $region67: #{center_ssa_pallas.1} parent=43 // pred_check
                _
              $region68: #{center_ssa_pallas.1} parent=43 // pred_check_branch
                %265 = sbr.rel target = $region70
              $region69: #{center_ssa_pallas.1} parent=43 // pred_region
                _
              $region70: #{center_ssa_pallas.1} parent=43 // pred_fallthru
                _
            $region44: #{center_ssa_pallas.1} parent=39 // pred_fallthru
              _
            // Predicated region
            $region45: #{center_ssa_pallas.1} parent=39 // pred_check
              _
            $region46: #{center_ssa_pallas.1} parent=39 // pred_check_branch
              %235 = sbr.rel target = $region48
            $region47: #{center_ssa_pallas.1} parent=39 // pred_region
              %s237 = ssub.s32 256, 1
              loop: start=0, step=1, limit=1
              $region49: #{center_ssa_pallas.1} parent=47 // loop_pre_header
                _
              $region50: #{center_ssa_pallas.1} parent=47 // loop_header
                %s239 = sphi 0, %s243
                %p240 = scmp.ge.s32.totalorder %s239, 1
                %s244 = sphi %s229, %s229
                %s245 = sphi %s227, %s227
              $region51: #{center_ssa_pallas.1} parent=47 // loop_header_branch
                %242 = sbr.rel (%p240) target = $region55
              $region52: #{center_ssa_pallas.1} parent=47 // loop_body
                %v246 = vld [vmem:[%s244] sm:%s237]
                %247 = vst [vmem:[%s245] sm:%s237] %v246
                %v248 = vld [vmem:[%s244 + $0x18] sm:%s237]
                %249 = vst [vmem:[%s245 + $0x8] sm:%s237] %v248
              $region53: #{center_ssa_pallas.1} parent=47 // loop_footer
                %s243 = sadd.s32 1, %s239
              $region54: #{center_ssa_pallas.1} parent=47 // loop_footer_branch
                %238 = sbr.rel target = $region50
              $region55: #{center_ssa_pallas.1} parent=47 // loop_exit
                _
            $region48: #{center_ssa_pallas.1} parent=39 // pred_fallthru
              _
          $region40: #{center_ssa_pallas.1} parent=35 // pred_fallthru
            _
          %266 = vnop
        $region36: #{center_ssa_pallas.1} parent=31 // pred_fallthru
          _
      $region32: #{center_ssa_pallas.1} parent=5 // pred_fallthru
        _
      %p267 = scmp.le.s32.totalorder 1, %s16
      %p268 = scmp.lt.s32.totalorder %s16, 4
      %p269 = pnand %p267, %p268
      %p270 = pneg %p269
      // Predicated region
      $region71: #{center_ssa_pallas.1} parent=5 // pred_check
        _
      $region72: #{center_ssa_pallas.1} parent=5 // pred_check_branch
        %272 = sbr.rel (%p269) target = $region74
      $region73: #{center_ssa_pallas.1} parent=5 // pred_region
        %s273 = ssub.s32 %s16, 1
        %s274 = sand.u32 %s29, 1
        %s275 = sand.u32 %s29, 1
        %s276 = smul.addr %s275, 16
        %s277 = scalar_lea.vmem [#allocation2], %s276
        // Predicated region
        $region75: #{center_ssa_pallas.1} parent=73 // pred_check
          %p278 = pneg %p42
        $region76: #{center_ssa_pallas.1} parent=73 // pred_check_branch
          %280 = sbr.rel (%p278) target = $region78
        $region77: #{center_ssa_pallas.1} parent=73 // pred_region
          _
        $region78: #{center_ssa_pallas.1} parent=73 // pred_fallthru
          _
        // Predicated region
        $region79: #{center_ssa_pallas.1} parent=73 // pred_check
          %p281 = pneg %p63
        $region80: #{center_ssa_pallas.1} parent=73 // pred_check_branch
          %283 = sbr.rel (%p281) target = $region82
        $region81: #{center_ssa_pallas.1} parent=73 // pred_region
          %285 = dma.done [#allocation4], 2048
        $region82: #{center_ssa_pallas.1} parent=73 // pred_fallthru
          _
        // Predicated region
        $region83: #{center_ssa_pallas.1} parent=73 // pred_check
          %p286 = pneg %p105
        $region84: #{center_ssa_pallas.1} parent=73 // pred_check_branch
          %288 = sbr.rel (%p286) target = $region86
        $region85: #{center_ssa_pallas.1} parent=73 // pred_region
          %290 = dma.done [#allocation7], 2048
        $region86: #{center_ssa_pallas.1} parent=73 // pred_fallthru
          _
        %s291 = sand.u32 %s29, 1
        %s292 = sand.u32 %s29, 1
        %s293 = smul.addr %s292, 16
        %s294 = scalar_lea.vmem [#allocation2], %s293
        %p295 = pneg %p42
        %p296 = pneg %p39
        %p297 = pneg %p63
        %p298 = pneg %p60
        %p299 = pneg %p84
        %p300 = pneg %p81
        %p301 = pneg %p105
        %p302 = pneg %p102
        %p303 = pneg %p126
        %p304 = pneg %p123
        %p305 = pneg %p147
        %p306 = pneg %p144
        %p307 = pneg %p168
        %p308 = pneg %p165
        %p309 = scmp.eq.s32.totalorder %s21, 0
        // Predicated region
        $region87: #{center_ssa_pallas.1} parent=73 // pred_check
          %p310 = pneg %p309
        $region88: #{center_ssa_pallas.1} parent=73 // pred_check_branch
          %312 = sbr.rel (%p310) target = $region90
        $region89: #{center_ssa_pallas.1} parent=73 // pred_region
          %vm313 = vcmask 0
          %314 = vst.msk [vmem:[#allocation8] sm:$0x1] %vm313, 0.0
          %vm315 = vcmask 1024
          %316 = vst.msk [vmem:[%s6] sm:$0x3] %vm315, 0.0
        $region90: #{center_ssa_pallas.1} parent=73 // pred_fallthru
          _
        %v317 = vld [vmem:[%s277] sm:$0xff]
        %v318 = vld [vmem:[%s277 + $0x8] sm:$0xff]
        %v319 = vld [vmem:[%s2] sm:$0x1]
        %v320 = vpack.c.bf16 %v317, %v317
        %v321 = vld [vmem:[#allocation3] sm:$0xf]
        %v322 = vld [vmem:[#allocation3 + $0x4] sm:$0xf]
        %v323 = vld [vmem:[#allocation3 + $0x8] sm:$0xf]
        %v324 = vld [vmem:[#allocation3 + $0xc] sm:$0xf]
        %v325 = vld [vmem:[#allocation3 + $0x10] sm:$0xf]
        %v326 = vld [vmem:[#allocation3 + $0x14] sm:$0xf]
        %v327 = vld [vmem:[#allocation3 + $0x18] sm:$0xf]
        %v328 = vld [vmem:[#allocation3 + $0x1c] sm:$0xf]
        %v329 = vld [vmem:[#allocation3 + $0x20] sm:$0xf]
        %v330 = vld [vmem:[#allocation3 + $0x24] sm:$0xf]
        %v331 = vld [vmem:[#allocation3 + $0x28] sm:$0xf]
        %v332 = vld [vmem:[#allocation3 + $0x2c] sm:$0xf]
        %v333 = vld [vmem:[#allocation3 + $0x30] sm:$0xf]
        %v334 = vld [vmem:[#allocation3 + $0x34] sm:$0xf]
        %v335 = vld [vmem:[#allocation3 + $0x38] sm:$0xf]
        %v336 = vld [vmem:[#allocation3 + $0x3c] sm:$0xf]
        %v353 = vunpack.c.l.b16 %v321
        %v354 = vunpack.c.l.b16 %v322
        %v355 = vunpack.c.l.b16 %v323
        %v356 = vunpack.c.l.b16 %v324
        %v357 = vunpack.c.l.b16 %v325
        %v358 = vunpack.c.l.b16 %v326
        %v359 = vunpack.c.l.b16 %v327
        %v360 = vunpack.c.l.b16 %v328
        %v361 = vunpack.c.l.b16 %v329
        %v362 = vunpack.c.l.b16 %v330
        %v363 = vunpack.c.l.b16 %v331
        %v364 = vunpack.c.l.b16 %v332
        %v365 = vunpack.c.l.b16 %v333
        %v366 = vunpack.c.l.b16 %v334
        %v367 = vunpack.c.l.b16 %v335
        %v368 = vunpack.c.l.b16 %v336
        %v369 = vpack.c.b16 %v354, %v353
        %v370 = vpack.c.b16 %v356, %v355
        %v371 = vpack.c.b16 %v358, %v357
        %v372 = vpack.c.b16 %v360, %v359
        %v373 = vpack.c.b16 %v362, %v361
        %v374 = vpack.c.b16 %v364, %v363
        %v375 = vpack.c.b16 %v366, %v365
        %v376 = vpack.c.b16 %v368, %v367
        %385 = vmatpush.bf16.msra.mxu0 %v376
        %386 = vmatpush.bf16.msra.mxu0 %v375
        %387 = vmatpush.bf16.msra.mxu0 %v374
        %388 = vmatpush.bf16.msra.mxu0 %v373
        %389 = vmatpush.bf16.msra.mxu0 %v372
        %390 = vmatpush.bf16.msra.mxu0 %v371
        %391 = vmatpush.bf16.msra.mxu0 %v370
        %392 = vmatpush.bf16.msra.mxu0 %v369
        %393 = vmatmul.bf16.gmra.mxu0 %v320
        %v394 = vpop.f32.mrf.mxu0
        %v395 = vadd.f32 0.0, %v394
        %v396 = vpop.f32.mrf.mxu0
        %397 = vdwg.mxu0
        %v399 = vperm.slane %v319, 0
        %v401 = vadd.f32 %v399, %v395
        %v402 = vpack.c.bf16 %v318, %v318
        %s403 = scalar_lea.vmem [#allocation3], 64
        %v404 = vld [vmem:[%s403] sm:$0xf]
        %v405 = vld [vmem:[%s403 + $0x4] sm:$0xf]
        %v406 = vld [vmem:[%s403 + $0x8] sm:$0xf]
        %v407 = vld [vmem:[%s403 + $0xc] sm:$0xf]
        %v408 = vld [vmem:[%s403 + $0x10] sm:$0xf]
        %v409 = vld [vmem:[%s403 + $0x14] sm:$0xf]
        %v410 = vld [vmem:[%s403 + $0x18] sm:$0xf]
        %v411 = vld [vmem:[%s403 + $0x1c] sm:$0xf]
        %v412 = vld [vmem:[%s403 + $0x20] sm:$0xf]
        %v413 = vld [vmem:[%s403 + $0x24] sm:$0xf]
        %v414 = vld [vmem:[%s403 + $0x28] sm:$0xf]
        %v415 = vld [vmem:[%s403 + $0x2c] sm:$0xf]
        %v416 = vld [vmem:[%s403 + $0x30] sm:$0xf]
        %v417 = vld [vmem:[%s403 + $0x34] sm:$0xf]
        %v418 = vld [vmem:[%s403 + $0x38] sm:$0xf]
        %v419 = vld [vmem:[%s403 + $0x3c] sm:$0xf]
        %v436 = vunpack.c.l.b16 %v404
        %v437 = vunpack.c.l.b16 %v405
        %v438 = vunpack.c.l.b16 %v406
        %v439 = vunpack.c.l.b16 %v407
        %v440 = vunpack.c.l.b16 %v408
        %v441 = vunpack.c.l.b16 %v409
        %v442 = vunpack.c.l.b16 %v410
        %v443 = vunpack.c.l.b16 %v411
        %v444 = vunpack.c.l.b16 %v412
        %v445 = vunpack.c.l.b16 %v413
        %v446 = vunpack.c.l.b16 %v414
        %v447 = vunpack.c.l.b16 %v415
        %v448 = vunpack.c.l.b16 %v416
        %v449 = vunpack.c.l.b16 %v417
        %v450 = vunpack.c.l.b16 %v418
        %v451 = vunpack.c.l.b16 %v419
        %v452 = vpack.c.b16 %v437, %v436
        %v453 = vpack.c.b16 %v439, %v438
        %v454 = vpack.c.b16 %v441, %v440
        %v455 = vpack.c.b16 %v443, %v442
        %v456 = vpack.c.b16 %v445, %v444
        %v457 = vpack.c.b16 %v447, %v446
        %v458 = vpack.c.b16 %v449, %v448
        %v459 = vpack.c.b16 %v451, %v450
        %468 = vmatpush.bf16.msra.mxu0 %v459
        %469 = vmatpush.bf16.msra.mxu0 %v458
        %470 = vmatpush.bf16.msra.mxu0 %v457
        %471 = vmatpush.bf16.msra.mxu0 %v456
        %472 = vmatpush.bf16.msra.mxu0 %v455
        %473 = vmatpush.bf16.msra.mxu0 %v454
        %474 = vmatpush.bf16.msra.mxu0 %v453
        %475 = vmatpush.bf16.msra.mxu0 %v452
        %476 = vmatmul.bf16.gmra.mxu0 %v402
        %v477 = vpop.f32.mrf.mxu0
        %v478 = vadd.f32 0.0, %v477
        %v479 = vpop.f32.mrf.mxu0
        %480 = vdwg.mxu0
        %v481 = vadd.f32 %v401, %v478
        %v482 = vpack.c.bf16 %v481, %v481
        %v483 = vld [vmem:[#allocation6] sm:$0xf]
        %v484 = vld [vmem:[#allocation6 + $0x4] sm:$0xf]
        %v485 = vld [vmem:[#allocation6 + $0x8] sm:$0xf]
        %v486 = vld [vmem:[#allocation6 + $0xc] sm:$0xf]
        %v487 = vld [vmem:[#allocation6 + $0x10] sm:$0xf]
        %v488 = vld [vmem:[#allocation6 + $0x14] sm:$0xf]
        %v489 = vld [vmem:[#allocation6 + $0x18] sm:$0xf]
        %v490 = vld [vmem:[#allocation6 + $0x1c] sm:$0xf]
        %v491 = vld [vmem:[#allocation6 + $0x20] sm:$0xf]
        %v492 = vld [vmem:[#allocation6 + $0x24] sm:$0xf]
        %v493 = vld [vmem:[#allocation6 + $0x28] sm:$0xf]
        %v494 = vld [vmem:[#allocation6 + $0x2c] sm:$0xf]
        %v495 = vld [vmem:[#allocation6 + $0x30] sm:$0xf]
        %v496 = vld [vmem:[#allocation6 + $0x34] sm:$0xf]
        %v497 = vld [vmem:[#allocation6 + $0x38] sm:$0xf]
        %v498 = vld [vmem:[#allocation6 + $0x3c] sm:$0xf]
        %v499 = vld [vmem:[%s4] sm:$0x1]
        %v501 = vperm.slane %v499, 0
        %v519 = vunpack.c.l.b16 %v483
        %v520 = vunpack.c.l.b16 %v484
        %v521 = vunpack.c.l.b16 %v485
        %v522 = vunpack.c.l.b16 %v486
        %v523 = vunpack.c.l.b16 %v487
        %v524 = vunpack.c.l.b16 %v488
        %v525 = vunpack.c.l.b16 %v489
        %v526 = vunpack.c.l.b16 %v490
        %v527 = vunpack.c.l.b16 %v491
        %v528 = vunpack.c.l.b16 %v492
        %v529 = vunpack.c.l.b16 %v493
        %v530 = vunpack.c.l.b16 %v494
        %v531 = vunpack.c.l.b16 %v495
        %v532 = vunpack.c.l.b16 %v496
        %v533 = vunpack.c.l.b16 %v497
        %v534 = vunpack.c.l.b16 %v498
        %v535 = vpack.c.b16 %v520, %v519
        %v536 = vpack.c.b16 %v522, %v521
        %v537 = vpack.c.b16 %v524, %v523
        %v538 = vpack.c.b16 %v526, %v525
        %v539 = vpack.c.b16 %v528, %v527
        %v540 = vpack.c.b16 %v530, %v529
        %v541 = vpack.c.b16 %v532, %v531
        %v542 = vpack.c.b16 %v534, %v533
        %551 = vmatpush.bf16.msra.mxu0 %v542
        %552 = vmatpush.bf16.msra.mxu0 %v541
        %553 = vmatpush.bf16.msra.mxu0 %v540
        %554 = vmatpush.bf16.msra.mxu0 %v539
        %555 = vmatpush.bf16.msra.mxu0 %v538
        %556 = vmatpush.bf16.msra.mxu0 %v537
        %557 = vmatpush.bf16.msra.mxu0 %v536
        %558 = vmatpush.bf16.msra.mxu0 %v535
        %559 = vmatmul.bf16.gmra.mxu0 %v482
        %v560 = vpop.f32.mrf.mxu0
        %v561 = vadd.f32 %v501, %v560
        %v562 = vpop.f32.mrf.mxu0
        %563 = vdwg.mxu0
        %v564 = vsub.f32 %v561, %v317
        %v565 = vmul.f32 %v564, %v564
        %566 = vadd.xlane.f32.xlu0 %v565
        %v567 = vpop.xlane.xlu0 %566
        %v568 = vrot.slane %v567, 4
        %v569 = vadd.f32 %v567, %v568
        %v570 = vrot.slane %v569, 2
        %v571 = vadd.f32 %v569, %v570
        %v572 = vrot.slane %v571, 1
        %v573 = vadd.f32 %v571, %v572
        %s574 = vtos %v573
        %s575 = sadd.f32 %s574, 0.0
        %s576 = scalar_lea.vmem [#allocation6], 64
        %v577 = vld [vmem:[%s576] sm:$0xf]
        %v578 = vld [vmem:[%s576 + $0x4] sm:$0xf]
        %v579 = vld [vmem:[%s576 + $0x8] sm:$0xf]
        %v580 = vld [vmem:[%s576 + $0xc] sm:$0xf]
        %v581 = vld [vmem:[%s576 + $0x10] sm:$0xf]
        %v582 = vld [vmem:[%s576 + $0x14] sm:$0xf]
        %v583 = vld [vmem:[%s576 + $0x18] sm:$0xf]
        %v584 = vld [vmem:[%s576 + $0x1c] sm:$0xf]
        %v585 = vld [vmem:[%s576 + $0x20] sm:$0xf]
        %v586 = vld [vmem:[%s576 + $0x24] sm:$0xf]
        %v587 = vld [vmem:[%s576 + $0x28] sm:$0xf]
        %v588 = vld [vmem:[%s576 + $0x2c] sm:$0xf]
        %v589 = vld [vmem:[%s576 + $0x30] sm:$0xf]
        %v590 = vld [vmem:[%s576 + $0x34] sm:$0xf]
        %v591 = vld [vmem:[%s576 + $0x38] sm:$0xf]
        %v592 = vld [vmem:[%s576 + $0x3c] sm:$0xf]
        %s593 = scalar_lea.vmem %s4, 1
        %v594 = vld [vmem:[%s593] sm:$0x1]
        %v596 = vperm.slane %v594, 0
        %v614 = vunpack.c.l.b16 %v577
        %v615 = vunpack.c.l.b16 %v578
        %v616 = vunpack.c.l.b16 %v579
        %v617 = vunpack.c.l.b16 %v580
        %v618 = vunpack.c.l.b16 %v581
        %v619 = vunpack.c.l.b16 %v582
        %v620 = vunpack.c.l.b16 %v583
        %v621 = vunpack.c.l.b16 %v584
        %v622 = vunpack.c.l.b16 %v585
        %v623 = vunpack.c.l.b16 %v586
        %v624 = vunpack.c.l.b16 %v587
        %v625 = vunpack.c.l.b16 %v588
        %v626 = vunpack.c.l.b16 %v589
        %v627 = vunpack.c.l.b16 %v590
        %v628 = vunpack.c.l.b16 %v591
        %v629 = vunpack.c.l.b16 %v592
        %v630 = vpack.c.b16 %v615, %v614
        %v631 = vpack.c.b16 %v617, %v616
        %v632 = vpack.c.b16 %v619, %v618
        %v633 = vpack.c.b16 %v621, %v620
        %v634 = vpack.c.b16 %v623, %v622
        %v635 = vpack.c.b16 %v625, %v624
        %v636 = vpack.c.b16 %v627, %v626
        %v637 = vpack.c.b16 %v629, %v628
        %646 = vmatpush.bf16.msra.mxu0 %v637
        %647 = vmatpush.bf16.msra.mxu0 %v636
        %648 = vmatpush.bf16.msra.mxu0 %v635
        %649 = vmatpush.bf16.msra.mxu0 %v634
        %650 = vmatpush.bf16.msra.mxu0 %v633
        %651 = vmatpush.bf16.msra.mxu0 %v632
        %652 = vmatpush.bf16.msra.mxu0 %v631
        %653 = vmatpush.bf16.msra.mxu0 %v630
        %654 = vmatmul.bf16.gmra.mxu0 %v482
        %v655 = vpop.f32.mrf.mxu0
        %v656 = vadd.f32 %v596, %v655
        %v657 = vpop.f32.mrf.mxu0
        %658 = vdwg.mxu0
        %v659 = vsub.f32 %v656, %v318
        %v660 = vmul.f32 %v659, %v659
        %661 = vadd.xlane.f32.xlu0 %v660
        %v662 = vpop.xlane.xlu0 %661
        %v663 = vrot.slane %v662, 4
        %v664 = vadd.f32 %v662, %v663
        %v665 = vrot.slane %v664, 2
        %v666 = vadd.f32 %v664, %v665
        %v667 = vrot.slane %v666, 1
        %v668 = vadd.f32 %v666, %v667
        %s669 = vtos %v668
        %s670 = sadd.f32 %s575, %s669
        %v671 = vld [vmem:[#allocation8] sm:$0x1]
        %v672 = vstv %s670
        %v673 = vadd.f32 %v671, %v672
        %vm674 = vcmask 0
        %675 = vst.msk [vmem:[#allocation8] sm:$0x1] %vm674, %v673
        %v676 = vmul.f32 %v481, %v481
        %677 = vadd.xlane.f32.xlu0 %v676
        %v678 = vpop.xlane.xlu0 %677
        %v679 = vmax.f32 %v678, 1e-24
        %v680 = vrsqrt.pop %v679
        %v681 = vmul.f32 %v680, %v679
        %v682 = vmul.f32 %v681, %v680
        %v683 = vmul.f32 0.5, %v682
        %v684 = vsub.f32 1.5, %v683
        %v685 = vmul.f32 %v680, %v684
        %vm686 = vweird.f32 %v679
        %vm687 = vweird.f32 %v680
        %vm688 = vmor %vm686, %vm687
        %v689 = vsel %vm688, %v680, %v685
        %v690 = vmul.f32 %v317, %v317
        %v691 = vmul.f32 %v318, %v318
        %692 = vadd.xlane.f32.xlu0 %v690
        %v693 = vpop.xlane.xlu0 %692
        %694 = vadd.xlane.f32.xlu0 %v691
        %v695 = vpop.xlane.xlu0 %694
        %v696 = vmul.f32 %v317, %v481
        %v697 = vmul.f32 %v318, %v481
        %698 = vadd.xlane.f32.xlu0 %v696
        %v699 = vpop.xlane.xlu0 %698
        %700 = vadd.xlane.f32.xlu0 %v697
        %v701 = vpop.xlane.xlu0 %700
        %v702 = vmax.f32 %v693, 1e-24
        %v703 = vmax.f32 %v695, 1e-24
        %v704 = vrsqrt.pop %v702
        %v705 = vmul.f32 %v704, %v702
        %v706 = vmul.f32 %v705, %v704
        %v707 = vmul.f32 0.5, %v706
        %v708 = vsub.f32 1.5, %v707
        %v709 = vmul.f32 %v704, %v708
        %vm710 = vweird.f32 %v702
        %vm711 = vweird.f32 %v704
        %vm712 = vmor %vm710, %vm711
        %v713 = vsel %vm712, %v704, %v709
        %v714 = vrsqrt.pop %v703
        %v715 = vmul.f32 %v714, %v703
        %v716 = vmul.f32 %v715, %v714
        %v717 = vmul.f32 0.5, %v716
        %v718 = vsub.f32 1.5, %v717
        %v719 = vmul.f32 %v714, %v718
        %vm720 = vweird.f32 %v703
        %vm721 = vweird.f32 %v714
        %vm722 = vmor %vm720, %vm721
        %v723 = vsel %vm722, %v714, %v719
        %v724 = vmul.f32 %v699, %v713
        %v725 = vmul.f32 %v701, %v723
        %v726 = vmul.f32 %v724, %v689
        %v727 = vmul.f32 %v725, %v689
        %v728 = vmul.f32 %v693, %v713
        %v729 = vmul.f32 %v695, %v723
        %v730 = vmul.f32 %v728, %v713
        %v731 = vmul.f32 %v729, %v723
        %v732 = vmul.f32 %v678, %v689
        %v733 = vmul.f32 %v732, %v689
        %v734 = vmul.f32 %v730, %v730
        %v735 = vmul.f32 %v731, %v731
        %v736 = vrot.slane %v734, 4
        %v737 = vadd.f32 %v734, %v736
        %v738 = vrot.slane %v737, 2
        %v739 = vadd.f32 %v737, %v738
        %v740 = vrot.slane %v739, 1
        %v741 = vadd.f32 %v739, %v740
        %v742 = vrot.slane %v735, 4
        %v743 = vadd.f32 %v735, %v742
        %v744 = vrot.slane %v743, 2
        %v745 = vadd.f32 %v743, %v744
        %v746 = vrot.slane %v745, 1
        %v747 = vadd.f32 %v745, %v746
        %v748 = vmul.f32 %v733, %v733
        %vm749 = vcmask 7168
        %v750 = vsel %vm749, %v748, 0.0
        %751 = vadd.xlane.f32.xlu0 %v750
        %v752 = vpop.xlane.xlu0 %751
        %v753 = vrot.slane %v752, 4
        %v754 = vadd.f32 %v752, %v753
        %v755 = vrot.slane %v754, 2
        %v756 = vadd.f32 %v754, %v755
        %v757 = vrot.slane %v756, 1
        %v758 = vadd.f32 %v756, %v757
        %s759 = vtos %v758
        %v760 = vstv %s759
        %v761 = vadd.f32 %v741, %v760
        %v762 = vadd.f32 %v747, %v760
        %v763 = vmul.f32 %v726, %v726
        %v764 = vmul.f32 %v727, %v727
        %v765 = vrot.slane %v763, 4
        %v766 = vadd.f32 %v763, %v765
        %v767 = vrot.slane %v766, 2
        %v768 = vadd.f32 %v766, %v767
        %v769 = vrot.slane %v768, 1
        %v770 = vadd.f32 %v768, %v769
        %v771 = vrot.slane %v764, 4
        %v772 = vadd.f32 %v764, %v771
        %v773 = vrot.slane %v772, 2
        %v774 = vadd.f32 %v772, %v773
        %v775 = vrot.slane %v774, 1
        %v776 = vadd.f32 %v774, %v775
        %v777 = vmul.f32 %v770, 2.0
        %v778 = vmul.f32 %v776, 2.0
        %v779 = vsub.f32 %v761, %v777
        %v780 = vsub.f32 %v762, %v778
        %v781 = vld [vmem:[%s6] sm:$0x3]
        %vm784 = vcmask 1041409
        %v785 = vsel %vm784, %v780, %v779
        %v787 = vadd.f32 %v781, %v785
        %vm788 = vcmask 1024
        %789 = vst.msk [vmem:[%s6] sm:$0x3] %vm788, %v787
        %p790 = scmp.eq.s32.totalorder %s21, 2
        // Predicated region
        $region91: #{center_ssa_pallas.1} parent=73 // pred_check
          %p791 = pneg %p790
        $region92: #{center_ssa_pallas.1} parent=73 // pred_check_branch
          %793 = sbr.rel (%p791) target = $region94
        $region93: #{center_ssa_pallas.1} parent=73 // pred_region
          %v794 = vld [vmem:[#allocation8] sm:$0x1]
          %v795 = vmul.f32 %v794, 0.00016276042
          %796 = vst.msk [vmem:[#allocation8] sm:$0x1] %vm674, %v795
          %v797 = vld [vmem:[%s6] sm:$0x3]
          %v798 = vmax.f32 %v797, 0.0
          %v799 = vrsqrt.pop %v798
          %v800 = vmul.f32 %v799, %v798
          %v801 = vmul.f32 %v800, %v799
          %v802 = vmul.f32 0.5, %v801
          %v803 = vsub.f32 1.5, %v802
          %v804 = vmul.f32 %v799, %v803
          %v805 = vmul.f32 %v798, %v804
          %vm806 = vcmp.eq.f32.partialorder %v798, inf
          %v807 = vsel %vm806, %v798, %v805
          %vm808 = vcmp.eq.f32.partialorder %v798, 0.0
          %v809 = vand.u32 %v798, 2147483648
          %v810 = vsel %vm808, %v809, %v807
          %811 = vst.msk [vmem:[%s6] sm:$0x3] %vm788, %v810
        $region94: #{center_ssa_pallas.1} parent=73 // pred_fallthru
          _
        // Predicated region
        $region95: #{center_ssa_pallas.1} parent=73 // pred_check
          %p812 = pneg %p144
        $region96: #{center_ssa_pallas.1} parent=73 // pred_check_branch
          %814 = sbr.rel (%p812) target = $region98
        $region97: #{center_ssa_pallas.1} parent=73 // pred_region
          %816 = vsyncadd [#allocation5], 0
          %s818 = sshll.u32 [#allocation8], 4
          %s819 = int_to_ptr.vmem [resolvable:$true] %s818
          %s820 = sshll.u32 %s5, 4
          %s821 = int_to_ptr.hbm [resolvable:$true] %s820
          %823 = dma.vmem_to_hbm [thread:$0]  %s819, 16, %s821, [#allocation5]
        $region98: #{center_ssa_pallas.1} parent=73 // pred_fallthru
          _
        // Predicated region
        $region99: #{center_ssa_pallas.1} parent=73 // pred_check
          %p824 = pneg %p165
        $region100: #{center_ssa_pallas.1} parent=73 // pred_check_branch
          %826 = sbr.rel (%p824) target = $region102
        $region101: #{center_ssa_pallas.1} parent=73 // pred_region
          _
        $region102: #{center_ssa_pallas.1} parent=73 // pred_fallthru
          _
        // Predicated region
        $region103: #{center_ssa_pallas.1} parent=73 // pred_check
          %p827 = pneg %p144
        $region104: #{center_ssa_pallas.1} parent=73 // pred_check_branch
          %829 = sbr.rel (%p827) target = $region106
        $region105: #{center_ssa_pallas.1} parent=73 // pred_region
          %831 = dma.done [#allocation5], 16
        $region106: #{center_ssa_pallas.1} parent=73 // pred_fallthru
          _
        // Predicated region
        $region107: #{center_ssa_pallas.1} parent=73 // pred_check
          %p832 = pneg %p165
        $region108: #{center_ssa_pallas.1} parent=73 // pred_check_branch
          %834 = sbr.rel (%p832) target = $region110
        $region109: #{center_ssa_pallas.1} parent=73 // pred_region
          _
        $region110: #{center_ssa_pallas.1} parent=73 // pred_fallthru
          _
      $region74: #{center_ssa_pallas.1} parent=5 // pred_fallthru
        _
      %p835 = scmp.le.s32.totalorder 2, %s16
      // Predicated region
      $region111: #{center_ssa_pallas.1} parent=5 // pred_check
        %p836 = pneg %p835
      $region112: #{center_ssa_pallas.1} parent=5 // pred_check_branch
        %838 = sbr.rel (%p836) target = $region114
      $region113: #{center_ssa_pallas.1} parent=5 // pred_region
        %s839 = ssub.s32 %s16, 2
      $region114: #{center_ssa_pallas.1} parent=5 // pred_fallthru
        _
    $region6: #{center_ssa_pallas.1} parent=1 // loop_footer
      %s20 = sadd.s32 1, %s16
    $region7: #{center_ssa_pallas.1} parent=1 // loop_footer_branch
      %15 = sbr.rel target = $region3
    $region8: #{center_ssa_pallas.1} parent=1 // loop_exit
      _
    %840 = vsyncpa [#allocation4], 1
    %s841 = scalar_lea.sflag [#allocation4], 1
    %842 = vsyncpa %s841, 1
    %843 = vsyncpa [#allocation7], 1
    %844 = vsyncpa [#allocation5], 1
    %s845 = scalar_lea.sflag [#allocation5], 1
    %846 = vsyncpa %s845, 1

</llo_original>
